<compile_context>
chip_gen: v7x
topology: tpu7x:2x2x1
jax: 0.10.0
libtpu: 0.0.40
codegen_flags: <defaults>
</compile_context>

<pallas_src>
import functools

import jax
import jax.numpy as jnp
from jax import lax
from jax.experimental import pallas as pl
from jax.experimental.pallas import tpu as pltpu


# --------------------------- hardware queries --------------------------------

@functools.lru_cache(maxsize=None)
def _tpu_limits():
    """Returns (vmem_capacity_bytes, tensorcores_per_device), with safe
    fallbacks (64 MiB / 1 core) if the query is unavailable."""
    cap = 64 << 20
    cores = 1
    try:
        info = pltpu.get_tpu_info()
        cap = int(getattr(info, "vmem_capacity_bytes", cap))
        for name in ("num_cores", "core_count", "num_tensorcores",
                     "tensorcore_count", "num_tensor_cores"):
            val = getattr(info, name, None)
            if val:
                cores = max(1, int(val))
                break
    except Exception:
        pass
    return cap, cores


def _round_up(x, m):
    return ((x + m - 1) // m) * m


def _budgets(resident_bytes):
    """(vmem_limit_bytes, feature-stream budget) scaled to this chip's VMEM."""
    cap, _ = _tpu_limits()
    vmem_limit = max(32 << 20, int(cap * 0.6))          # ~38 MiB v7x, ~76 MiB v5e/v6e
    stream_budget = min(int(cap * 0.3),
                        vmem_limit - resident_bytes - (6 << 20))
    stream_budget = max(4 << 20, stream_budget)
    return vmem_limit, stream_budget


def _row_tile(M):
    if M <= 512:
        return M
    return next((t for t in (512, 256, 128) if M % t == 0), M)


def _k_tiling(M, K, itemsize, stream_budget, max_tk):
    """Pick (tk, nk): the largest multiple-of-128 K tile whose double-buffered
    (M, tk) feature block fits the streaming budget, then rebalanced so the
    last block is not mostly padding."""
    K128 = _round_up(K, 128)
    tk_cap = max(128, (stream_budget // (2 * M * itemsize)) // 128 * 128)
    if max_tk is not None:
        tk_cap = max(128, min(tk_cap, _round_up(max_tk, 128)))
    tk_cap = min(tk_cap, K128)
    nk = pl.cdiv(K128, tk_cap)
    tk = _round_up(pl.cdiv(K128, nk), 128)
    return tk, nk


# ------------------------------ kernels ---------------------------------------

def _gram_kernel(f_ref, g_ref, *, scale, tm, nrb, use_bf16):
    """grid (nrb, nk): G row blocks are parallel, K is the reduction.
    The lhs tile is sliced in-kernel from the resident (M, tk) block, so the
    features are streamed once per row block (no separate lhs stream)."""
    k = pl.program_id(1)

    @pl.when(k == 0)
    def _():
        g_ref[...] = jnp.zeros_like(g_ref)

    fr = f_ref[...]                                     # (M, tk), native dtype
    if nrb == 1:
        fl = fr
    else:
        i = pl.program_id(0)
        fl = f_ref[pl.ds(pl.multiple_of(i * tm, tm), tm), :]   # (tm, tk)
    if use_bf16:
        fl = fl.astype(jnp.bfloat16)
        fr = fr.astype(jnp.bfloat16)
    g_ref[...] += lax.dot_general(
        fl, fr,
        dimension_numbers=(((1,), (1,)), ((), ())),     # contract K of both
        preferred_element_type=jnp.float32)

    @pl.when(k == pl.num_programs(1) - 1)
    def _():
        g_ref[...] *= scale


def _style_loss_kernel(f_ref, t_ref, p_ref, acc_ref, *, scale, tm, nrb, use_bf16):
    """Fused gram + MSE.  The G row block accumulates in a VMEM scratch; the
    target block is DMA'd once per row block (index constant across k).  At the
    last K step the squared error is reduced into an SMEM partial scalar."""
    k = pl.program_id(1)

    @pl.when(k == 0)
    def _():
        acc_ref[...] = jnp.zeros_like(acc_ref)

    fr = f_ref[...]
    if nrb == 1:
        fl = fr
    else:
        i = pl.program_id(0)
        fl = f_ref[pl.ds(pl.multiple_of(i * tm, tm), tm), :]
    if use_bf16:
        fl = fl.astype(jnp.bfloat16)
        fr = fr.astype(jnp.bfloat16)
    acc_ref[...] += lax.dot_general(
        fl, fr,
        dimension_numbers=(((1,), (1,)), ((), ())),
        preferred_element_type=jnp.float32)

    @pl.when(k == pl.num_programs(1) - 1)
    def _():
        diff = acc_ref[...] * scale - t_ref[...]
        p_ref[0, 0] = jnp.sum(diff * diff)


def _gram_ksplit_kernel(f_ref, g_ref, *, scale, use_bf16):
    """grid (nsplit, nk_split): K is split across a parallel axis (one partial
    gram per split / TensorCore); partials are summed by a tiny XLA epilogue."""
    k = pl.program_id(1)

    @pl.when(k == 0)
    def _():
        g_ref[...] = jnp.zeros_like(g_ref)

    f = f_ref[...]
    if use_bf16:
        f = f.astype(jnp.bfloat16)
    g_ref[...] += lax.dot_general(
        f, f,
        dimension_numbers=(((1,), (1,)), ((), ())),
        preferred_element_type=jnp.float32)

    @pl.when(k == pl.num_programs(1) - 1)
    def _():
        g_ref[...] *= scale


# ------------------------------ wrappers --------------------------------------

def _prep_features(x):
    a, b, c, d = x.shape
    M, K = a * b, c * d
    feats = x.reshape(M, K)
    scale = 1.0 / float(a * b * c * d)
    return feats, M, K, scale


def _pad_k(feats, K, K_pad):
    if K_pad != K:
        # Zero columns contribute nothing to F F^T.
        feats = jnp.pad(feats, ((0, 0), (0, K_pad - K)))
    return feats


def gram_matrix_pallas(x, *, use_bf16_matmul=False, max_tk=None):
    """G = F F^T / (a*b*c*d) for an NCHW feature map x (f32 output)."""
    feats, M, K, scale = _prep_features(x)
    itemsize = jnp.dtype(feats.dtype).itemsize
    tm = _row_tile(M)
    nrb = M // tm

    resident = 2 * tm * M * 4                           # double-buffered out block
    vmem_limit, stream_budget = _budgets(resident)
    tk, nk = _k_tiling(M, K, itemsize, stream_budget, max_tk)
    K_pad = nk * tk
    feats = _pad_k(feats, K, K_pad)

    cost = pl.CostEstimate(
        flops=2 * M * M * K_pad,
        transcendentals=0,
        bytes_accessed=nrb * M * K_pad * itemsize + M * M * 4)

    kernel = functools.partial(_gram_kernel, scale=scale, tm=tm, nrb=nrb,
                               use_bf16=use_bf16_matmul)
    return pl.pallas_call(
        kernel,
        out_shape=jax.ShapeDtypeStruct((M, M), jnp.float32),
        grid_spec=pltpu.PrefetchScalarGridSpec(
            num_scalar_prefetch=0,
            grid=(nrb, nk),
            in_specs=[pl.BlockSpec((M, tk), lambda i, k: (0, k))],
            out_specs=pl.BlockSpec((tm, M), lambda i, k: (i, 0)),
        ),
        compiler_params=pltpu.CompilerParams(
            dimension_semantics=("parallel", "arbitrary"),
            vmem_limit_bytes=vmem_limit),
        cost_estimate=cost,
    )(feats)


def style_loss_pallas(x, target_gram, *, use_bf16_matmul=False,
                      num_k_splits=None, max_tk=None):
    """mean((gram(x) - target_gram)^2) with gram + MSE fused in one kernel."""
    feats, M, K, scale = _prep_features(x)
    target_gram = target_gram.astype(jnp.float32)
    itemsize = jnp.dtype(feats.dtype).itemsize
    _, cores = _tpu_limits()
    tm = _row_tile(M)
    nrb = M // tm

    resident = 3 * tm * M * 4              # target (double-buffered) + acc scratch
    vmem_limit, stream_budget = _budgets(resident)
    tk, nk = _k_tiling(M, K, itemsize, stream_budget, max_tk)

    # Optional K-split (single-row-block regime only): engages both TensorCores
    # on v7x for the common M <= 512 case without re-streaming the features.
    nsplit = 1
    if nrb == 1 and nk >= 2:
        if num_k_splits is not None:
            nsplit = max(1, min(int(num_k_splits), nk))
        elif (cores > 1 and nk >= cores and
              M * _round_up(K, 128) * itemsize >= 8 * cores * M * M * 4):
            nsplit = cores

    if nsplit > 1:
        nks = pl.cdiv(nk, nsplit)
        K_pad = nsplit * nks * tk
        feats = _pad_k(feats, K, K_pad)
        cost = pl.CostEstimate(
            flops=2 * M * M * K_pad,
            transcendentals=0,
            bytes_accessed=M * K_pad * itemsize + nsplit * M * M * 4)
        kernel = functools.partial(_gram_ksplit_kernel, scale=scale,
                                   use_bf16=use_bf16_matmul)
        partial_g = pl.pallas_call(
            kernel,
            out_shape=jax.ShapeDtypeStruct((nsplit, M, M), jnp.float32),
            grid_spec=pltpu.PrefetchScalarGridSpec(
                num_scalar_prefetch=0,
                grid=(nsplit, nks),
                in_specs=[pl.BlockSpec((M, tk),
                                       lambda p, k: (0, p * nks + k))],
                out_specs=pl.BlockSpec((None, M, M),
                                       lambda p, k: (p, 0, 0)),
            ),
            compiler_params=pltpu.CompilerParams(
                dimension_semantics=("parallel", "arbitrary"),
                vmem_limit_bytes=vmem_limit),
            cost_estimate=cost,
        )(feats)
        g = jnp.sum(partial_g, axis=0)                  # tiny (M, M) combine
        return jnp.mean((g - target_gram) ** 2)

    # Fused single-pass path (also handles the row-tiled M > 512 case).
    K_pad = nk * tk
    feats = _pad_k(feats, K, K_pad)
    cost = pl.CostEstimate(
        flops=2 * M * M * K_pad,
        transcendentals=0,
        bytes_accessed=nrb * M * K_pad * itemsize + M * M * 4)
    kernel = functools.partial(_style_loss_kernel, scale=scale, tm=tm,
                               nrb=nrb, use_bf16=use_bf16_matmul)
    partials = pl.pallas_call(
        kernel,
        out_shape=jax.ShapeDtypeStruct((nrb, 1), jnp.float32),
        grid_spec=pltpu.PrefetchScalarGridSpec(
            num_scalar_prefetch=0,
            grid=(nrb, nk),
            in_specs=[pl.BlockSpec((M, tk), lambda i, k: (0, k)),
                      pl.BlockSpec((tm, M), lambda i, k: (i, 0))],
            out_specs=pl.BlockSpec((1, 1), lambda i, k: (i, 0),
                                   memory_space=pltpu.SMEM),
            scratch_shapes=[pltpu.VMEM((tm, M), jnp.float32)],
        ),
        compiler_params=pltpu.CompilerParams(
            dimension_semantics=("parallel", "arbitrary"),
            vmem_limit_bytes=vmem_limit),
        cost_estimate=cost,
    )(feats, target_gram)
    return jnp.sum(partials) * (1.0 / float(M * M))


# ------------------------------- Module port ----------------------------------

class StyleLoss:
    """JAX/Pallas port of the PyTorch StyleLoss module (forward pass)."""

    def __init__(self, target_feature, *, use_bf16_matmul=False):
        self._use_bf16 = use_bf16_matmul
        # .detach() equivalent; target gram kept in f32.
        self.target = lax.stop_gradient(gram_matrix_pallas(target_feature))
        self.loss = None

    def __call__(self, x):
        # TODO(synk): Python-side self.loss mutation mirrors the PyTorch module
        # but will not survive jax.jit of an enclosing model; call
        # style_loss_pallas(x, self.target) functionally in that case.
        self.loss = style_loss_pallas(x, self.target,
                                      use_bf16_matmul=self._use_bf16)
        return x                                        # forward returns input


# ------------------------------- self-test -------------------------------------

def _ref_gram(t):
    a, b, c, d = t.shape
    f = t.reshape(a * b, c * d).astype(jnp.float32)
    return (f @ f.T) / (a * b * c * d)


def _ref_loss(x, target_gram):
    return jnp.mean((_ref_gram(x) - target_gram) ** 2)


if __name__ == "__main__":
    key = jax.random.PRNGKey(0)
    k1, k2, k3, k4 = jax.random.split(key, 4)

    # --- main check: module semantics on small NCHW feature maps -------------
    target_feature = jax.random.normal(k1, (2, 4, 16, 16), dtype=jnp.float32)
    x = jax.random.normal(k2, (2, 4, 16, 16), dtype=jnp.float32)

    style = StyleLoss(target_feature)
    out = jax.block_until_ready(style(x))
    loss = jax.block_until_ready(style.loss)

    ref = _ref_loss(x, _ref_gram(target_feature))
    assert out.shape == x.shape
    assert jnp.allclose(out, x)
    assert jnp.allclose(loss, ref, rtol=1e-4, atol=1e-7), (loss, ref)

    # --- coverage: forced K tiling + dual K-split (1-D, M <= 512 regime) -----
    xf = 8.0 * jax.random.normal(k3, (1, 8, 16, 24), dtype=jnp.float32)
    tgt = 0.5 * _ref_gram(xf)
    l_split = jax.block_until_ready(
        style_loss_pallas(xf, tgt, num_k_splits=2, max_tk=128))
    l_split_ref = _ref_loss(xf, tgt)
    assert jnp.allclose(l_split, l_split_ref, rtol=1e-4, atol=1e-7), (
        l_split, l_split_ref)

    # --- coverage: row-tiled 2-D path (M > 512) with multi-step K reduction ---
    xr = 8.0 * jax.random.normal(k4, (2, 320, 16, 24), dtype=jnp.float32)
    g2 = jax.block_until_ready(gram_matrix_pallas(xr, max_tk=128))
    assert jnp.allclose(g2, _ref_gram(xr), rtol=1e-4, atol=1e-6)
    t2 = 0.25 * _ref_gram(xr)
    l2 = jax.block_until_ready(style_loss_pallas(xr, t2, max_tk=128))
    l2_ref = _ref_loss(xr, t2)
    assert jnp.allclose(l2, l2_ref, rtol=1e-4, atol=1e-7), (l2, l2_ref)

    print("KERNEL_OK")
</pallas_src>

<mosaic_0001>
module attributes {stable_mosaic.version = 11 : i64} {
  func.func @_gram_kernel(%arg0: i32, %arg1: i32, %arg2: memref<8x256xf32, #tpu.memory_space<vmem>>, %arg3: memref<8x8xf32, #tpu.memory_space<vmem>>) attributes {dimension_semantics = [#tpu.dimension_semantics<parallel>, #tpu.dimension_semantics<arbitrary>], iteration_bounds = array<i64: 1, 1>, scalar_prefetch = 0 : i64, scratch_operands = 0 : i64, tpu.core_type = #tpu.core_type<tc>, window_params = [{transform_indices = @transform_0, window_bounds = array<i64: 8, 256>}, {transform_indices = @transform_1, window_bounds = array<i64: 8, 8>}]} {
    %c0_i32 = arith.constant 0 : i32
    %0 = arith.cmpi eq, %arg1, %c0_i32 : i32
    %1 = arith.extui %0 : i1 to i32
    %c0_i32_0 = arith.constant 0 : i32
    %2 = arith.cmpi ne, %1, %c0_i32_0 : i32
    scf.if %2 {
      %cst_8 = arith.constant 0.000000e+00 : f32
      %11 = vector.broadcast %cst_8 : f32 to vector<8x8xf32>
      %c0_9 = arith.constant 0 : index
      %c0_10 = arith.constant 0 : index
      %12 = vector.load %arg3[%c0_9, %c0_10] : memref<8x8xf32, #tpu.memory_space<vmem>>, vector<8x8xf32>
      tpu.vector_store %arg3[%c0_9, %c0_10], %11 {strides = array<i32>} : memref<8x8xf32, #tpu.memory_space<vmem>>, vector<8x8xf32>,
    } else {
    }
    %c0 = arith.constant 0 : index
    %c0_1 = arith.constant 0 : index
    %3 = vector.load %arg2[%c0, %c0_1] : memref<8x256xf32, #tpu.memory_space<vmem>>, vector<8x256xf32>
    %c0_2 = arith.constant 0 : index
    %c0_3 = arith.constant 0 : index
    %4 = vector.load %arg3[%c0_2, %c0_3] : memref<8x8xf32, #tpu.memory_space<vmem>>, vector<8x8xf32>
    %cst = arith.constant dense<0.000000e+00> : vector<8x8xf32>
    %5 = tpu.matmul %3, %3, %cst {dimension_numbers = #tpu.dot_dimension_numbers<[1], [1], [0], [0], [0, 0, 1, 0], [], []>} : vector<8x256xf32>, vector<8x256xf32>, vector<8x8xf32> -> vector<8x8xf32>
    %6 = arith.addf %4, %5 : vector<8x8xf32>
    %c0_4 = arith.constant 0 : index
    %c0_5 = arith.constant 0 : index
    %7 = vector.load %arg3[%c0_4, %c0_5] : memref<8x8xf32, #tpu.memory_space<vmem>>, vector<8x8xf32>
    tpu.vector_store %arg3[%c0_4, %c0_5], %6 {strides = array<i32>} : memref<8x8xf32, #tpu.memory_space<vmem>>, vector<8x8xf32>,
    %c0_i32_6 = arith.constant 0 : i32
    %8 = arith.cmpi eq, %arg1, %c0_i32_6 : i32
    %9 = arith.extui %8 : i1 to i32
    %c0_i32_7 = arith.constant 0 : i32
    %10 = arith.cmpi ne, %9, %c0_i32_7 : i32
    scf.if %10 {
      %c0_8 = arith.constant 0 : index
      %c0_9 = arith.constant 0 : index
      %11 = vector.load %arg3[%c0_8, %c0_9] : memref<8x8xf32, #tpu.memory_space<vmem>>, vector<8x8xf32>
      %cst_10 = arith.constant 4.8828125E-4 : f32
      %12 = vector.broadcast %cst_10 : f32 to vector<8x8xf32>
      %13 = arith.mulf %11, %12 : vector<8x8xf32>
      %c0_11 = arith.constant 0 : index
      %c0_12 = arith.constant 0 : index
      %14 = vector.load %arg3[%c0_11, %c0_12] : memref<8x8xf32, #tpu.memory_space<vmem>>, vector<8x8xf32>
      tpu.vector_store %arg3[%c0_11, %c0_12], %13 {strides = array<i32>} : memref<8x8xf32, #tpu.memory_space<vmem>>, vector<8x8xf32>,
    } else {
    }
    return
  }
  func.func @transform_0(%arg0: i32, %arg1: i32) -> (i32, i32) {
    %c0_i32 = arith.constant 0 : i32
    %c0_i32_0 = arith.constant 0 : i32
    return %c0_i32, %arg1 : i32, i32
  }
  func.func @transform_1(%arg0: i32, %arg1: i32) -> (i32, i32) {
    %c0_i32 = arith.constant 0 : i32
    %c0_i32_0 = arith.constant 0 : i32
    return %arg0, %c0_i32 : i32, i32
  }
}

</mosaic_0001>

<llo_original>
// kernel: tpu_custom_call.1
$region0: #{tpu_custom_call.1}
  #allocation0 [shape = 'u32[]', space=smem, size = 0x4, offset = 0x4, fixed_abs, tag = 'smem constant byte address 0x4 - core index']
  #allocation1 [shape = 'u32[144,128]{1,0:T(1,128)}', space=vmem, size = 0x12000, scoped, tag = 'internal scratch']
  %s0 = inlined_call_operand.hbm [shape: f32[8,256], index: 0, kind: input, shape index: {}]
  %s1 = inlined_call_operand.hbm [shape: f32[8,8], index: 1, kind: output, shape index: {}]
  %s2 = sld [smem:[#allocation0]]
  $region26: #{tpu_custom_call.1} parent=0
    _
  %s4 = ssub.s32 1, %s2
  %s5 = scalar_select 0, %s4, %s2
  $region1: #{tpu_custom_call.1} parent=0
    #allocation2 [shape = 'u8[8192]{0}', space=vmem, size = 0x2000, scoped, tag = 'input window, operand 0, single buffered']
    #allocation3 [shape = 's32[1]{0}', space=sflag, size = 0x4, scoped, tag = 'scoped memory for tpu_custom_call.1']
    #allocation4 [shape = 's32[1]{0}', space=sflag, size = 0x4, scoped, tag = 'scoped memory for tpu_custom_call.1']
    #allocation5 [shape = 'u8[4096]{0}', space=vmem, size = 0x1000, scoped, tag = 'output window, operand 0, single buffered']
    %6 = vsyncpa [#allocation3], 0
    %7 = vsyncpa [#allocation4], 0
    // Predicated region
    $region2: #{tpu_custom_call.1} parent=1 // pred_check
      _
    $region3: #{tpu_custom_call.1} parent=1 // pred_check_branch
      %9 = sbr.rel (0) target = $region5
    $region4: #{tpu_custom_call.1} parent=1 // pred_region
      %s11 = ssub.s32 256, 256
      %12 = vsyncadd [#allocation3], %s11
      %s14 = sshll.u32 [#allocation2], 4
      %s15 = int_to_ptr.vmem [resolvable:$true] %s14
      %17 = dma.hbm_to_vmem [thread:$0]  %s0, 256, %s15, [#allocation3]
    $region5: #{tpu_custom_call.1} parent=1 // pred_fallthru
      _
    // Predicated region
    $region6: #{tpu_custom_call.1} parent=1 // pred_check
      _
    $region7: #{tpu_custom_call.1} parent=1 // pred_check_branch
      %19 = sbr.rel (0) target = $region9
    $region8: #{tpu_custom_call.1} parent=1 // pred_region
      %20 = dma.done [#allocation3], 256
    $region9: #{tpu_custom_call.1} parent=1 // pred_fallthru
      _
    %p21 = scmp.eq.s32.totalorder 0, 0
    // Predicated region
    $region10: #{tpu_custom_call.1} parent=1 // pred_check
      %p22 = pneg %p21
    $region11: #{tpu_custom_call.1} parent=1 // pred_check_branch
      %24 = sbr.rel (%p22) target = $region13
    $region12: #{tpu_custom_call.1} parent=1 // pred_region
      %vm25 = vcmask 64512
      %26 = vst.msk [vmem:[#allocation5] sm:$0xff] %vm25, 0.0
    $region13: #{tpu_custom_call.1} parent=1 // pred_fallthru
      _
    %v27 = vld [vmem:[#allocation2] sm:$0xff]
    %v28 = vld [vmem:[#allocation2 + $0x8] sm:$0xff]
    %v29 = vld [vmem:[#allocation5] sm:$0xff]
    %30 = vmatprep.subr.mxu0 %v28
    %31 = vmatpush1.xpose.msra.mxu0 %v27
    %32 = vmatprep.subr.mxu0 0.0
    %33 = vmatpush1.xpose.msra.mxu0 0.0
    %34 = vmatprep.subr.mxu0 0.0
    %35 = vmatpush1.xpose.msra.mxu0 0.0
    %36 = vmatprep.subr.mxu0 0.0
    %37 = vmatpush1.xpose.msra.mxu0 0.0
    %38 = vmatprep.subr.mxu0 0.0
    %39 = vmatpush1.xpose.msra.mxu0 0.0
    %40 = vmatprep.subr.mxu0 0.0
    %41 = vmatpush1.xpose.msra.mxu0 0.0
    %42 = vmatprep.subr.mxu0 0.0
    %43 = vmatpush1.xpose.msra.mxu0 0.0
    %44 = vmatprep.subr.mxu0 0.0
    %45 = vmatpush1.xpose.msra.mxu0 0.0
    %46 = vmatprep.subr.mxu0 0.0
    %47 = vmatpush1.xpose.msra.mxu0 0.0
    %48 = vmatprep.subr.mxu0 0.0
    %49 = vmatpush1.xpose.msra.mxu0 0.0
    %50 = vmatprep.subr.mxu0 0.0
    %51 = vmatpush1.xpose.msra.mxu0 0.0
    %52 = vmatprep.subr.mxu0 0.0
    %53 = vmatpush1.xpose.msra.mxu0 0.0
    %54 = vmatprep.subr.mxu0 0.0
    %55 = vmatpush1.xpose.msra.mxu0 0.0
    %56 = vmatprep.subr.mxu0 0.0
    %57 = vmatpush1.xpose.msra.mxu0 0.0
    %58 = vmatprep.subr.mxu0 0.0
    %59 = vmatpush1.xpose.msra.mxu0 0.0
    %60 = vmatprep.subr.mxu0 0.0
    %61 = vmatpush1.xpose.msra.mxu0 0.0
    %62 = vmatprep.subr.mxu0 0.0
    %63 = vmatpush1.xpose.msra.mxu0 0.0
    %64 = vmatprep.subr.mxu0 0.0
    %65 = vmatpush1.xpose.msra.mxu0 0.0
    %66 = vmatprep.subr.mxu0 0.0
    %67 = vmatpush1.xpose.msra.mxu0 0.0
    %68 = vmatprep.subr.mxu0 0.0
    %69 = vmatpush1.xpose.msra.mxu0 0.0
    %70 = vmatprep.subr.mxu0 0.0
    %71 = vmatpush1.xpose.msra.mxu0 0.0
    %72 = vmatprep.subr.mxu0 0.0
    %73 = vmatpush1.xpose.msra.mxu0 0.0
    %74 = vmatprep.subr.mxu0 0.0
    %75 = vmatpush1.xpose.msra.mxu0 0.0
    %76 = vmatprep.subr.mxu0 0.0
    %77 = vmatpush1.xpose.msra.mxu0 0.0
    %78 = vmatprep.subr.mxu0 0.0
    %79 = vmatpush1.xpose.msra.mxu0 0.0
    %80 = vmatprep.subr.mxu0 0.0
    %81 = vmatpush1.xpose.msra.mxu0 0.0
    %82 = vmatprep.subr.mxu0 0.0
    %83 = vmatpush1.xpose.msra.mxu0 0.0
    %84 = vmatprep.subr.mxu0 0.0
    %85 = vmatpush1.xpose.msra.mxu0 0.0
    %86 = vmatprep.subr.mxu0 0.0
    %87 = vmatpush1.xpose.msra.mxu0 0.0
    %88 = vmatprep.subr.mxu0 0.0
    %89 = vmatpush1.xpose.msra.mxu0 0.0
    %90 = vmatprep.subr.mxu0 0.0
    %91 = vmatpush1.xpose.msra.mxu0 0.0
    %92 = vmatprep.subr.mxu0 0.0
    %93 = vmatpush1.xpose.msra.mxu0 0.0
    %94 = vmatprep.mubr.f32.mxu0 %v28
    %95 = vmatmul.mubr.f32.gmra.mrb[0].mxu0 %v27
    %v96 = vpop.f32.mrb[0].mxu0
    %v97 = vadd.f32 0.0, %v96
    %v98 = vpop.f32.mrb[0].mxu0
    %99 = vdwg.mxu0
    %v100 = vadd.f32 %v29, %v97
    %vm101 = vcmask 64512
    %102 = vst.msk [vmem:[#allocation5] sm:$0xff] %vm101, %v100
    // Predicated region
    $region14: #{tpu_custom_call.1} parent=1 // pred_check
      %p103 = pneg %p21
    $region15: #{tpu_custom_call.1} parent=1 // pred_check_branch
      %105 = sbr.rel (%p103) target = $region17
    $region16: #{tpu_custom_call.1} parent=1 // pred_region
      %v106 = vld [vmem:[#allocation5] sm:$0xff]
      %v107 = vmul.f32 %v106, 0.00048828125
      %108 = vst.msk [vmem:[#allocation5] sm:$0xff] %vm101, %v107
    $region17: #{tpu_custom_call.1} parent=1 // pred_fallthru
      _
    // Predicated region
    $region18: #{tpu_custom_call.1} parent=1 // pred_check
      _
    $region19: #{tpu_custom_call.1} parent=1 // pred_check_branch
      %110 = sbr.rel (0) target = $region21
    $region20: #{tpu_custom_call.1} parent=1 // pred_region
      %s112 = ssub.s32 128, 128
      %113 = vsyncadd [#allocation4], %s112
      %s115 = sshll.u32 [#allocation5], 4
      %s116 = int_to_ptr.vmem [resolvable:$true] %s115
      %118 = dma.vmem_to_hbm [thread:$0]  %s116, 128, %s1, [#allocation4]
    $region21: #{tpu_custom_call.1} parent=1 // pred_fallthru
      _
    // Predicated region
    $region22: #{tpu_custom_call.1} parent=1 // pred_check
      _
    $region23: #{tpu_custom_call.1} parent=1 // pred_check_branch
      %120 = sbr.rel (0) target = $region25
    $region24: #{tpu_custom_call.1} parent=1 // pred_region
      %121 = dma.done [#allocation4], 128
    $region25: #{tpu_custom_call.1} parent=1 // pred_fallthru
      _
    %122 = vsyncpa [#allocation3], 1
    %123 = vsyncpa [#allocation4], 1

</llo_original>
